<compile_context>
chip_gen: v7x
topology: tpu7x:2x2x1
jax: 0.10.0
libtpu: 0.0.40
codegen_flags: <defaults>
</compile_context>

<pallas_src>
import jax
import jax.numpy as jnp
from jax.experimental import pallas as pl
from jax.experimental.pallas import tpu as pltpu

_LANE = 128  # TPU vreg lane width


def _viscous_damping_kernel(eta_ref, v_ref, f_ref):
    # eta_ref: (1, width) broadcasts over the row tile; pure VPU elementwise multiply.
    f_ref[...] = (eta_ref[...] * v_ref[...]).astype(f_ref.dtype)


def viscous_joint_damping_force(q, v, u, eta, *,
                                min_pallas_batch=8192,
                                rows_per_block=2048):
    """Forward for ViscousJointDampingForce. Returns F of shape (B, qdim, 1)."""
    B, qdim = q.shape
    assert v.shape == (B, qdim), (v.shape, (B, qdim))
    assert eta.shape == (1, qdim), eta.shape
    assert u.shape[0] == B, u.shape

    # ---- Small-B fast path: skip Pallas entirely (launch overhead >> compute). ----
    if B < min_pallas_batch:
        return (eta * v)[:, :, None]

    # ---- Lane-dense relayout: pack 128 batch rows into each vector row. ----
    B_pad = pl.cdiv(B, _LANE) * _LANE
    v_p = jnp.pad(v, ((0, B_pad - B), (0, 0))) if B_pad != B else v
    rows = B_pad // _LANE
    width = _LANE * qdim                      # e.g. 384 for qdim=3 (multiple of 128)
    v2 = v_p.reshape(rows, width)             # row r = batch rows [r*128, (r+1)*128)
    eta_row = jnp.tile(eta, (1, _LANE))       # (1, width); element p -> eta[p % qdim]

    # ---- Block sizing: big, MiB-scale tiles; grid=(1,) for most B. ----
    block_r = rows if rows <= rows_per_block else rows_per_block
    if block_r != rows and block_r % 8:
        block_r = max(8, (block_r // 8) * 8)  # (8,128) constraint for partial dim
    grid_steps = pl.cdiv(rows, block_r)

    # Megacore sharding only worthwhile with several substantial tiles.
    sem = "parallel" if grid_steps >= 4 else "arbitrary"

    itemsize = jnp.dtype(v.dtype).itemsize
    bytes_accessed = (2 * rows * width + width) * itemsize

    f2 = pl.pallas_call(
        _viscous_damping_kernel,
        out_shape=jax.ShapeDtypeStruct((rows, width), v.dtype),
        grid_spec=pltpu.PrefetchScalarGridSpec(
            num_scalar_prefetch=0,
            grid=(grid_steps,),
            in_specs=[
                pl.BlockSpec((1, width), lambda i: (0, 0)),        # eta row: VMEM-resident
                pl.BlockSpec((block_r, width), lambda i: (i, 0)),  # v: lane-dense tiles
            ],
            out_specs=pl.BlockSpec((block_r, width), lambda i: (i, 0)),
        ),
        compiler_params=pltpu.CompilerParams(
            dimension_semantics=(sem,),
        ),
        cost_estimate=pl.CostEstimate(
            flops=rows * width, transcendentals=0, bytes_accessed=bytes_accessed),
    )(eta_row, v2)

    # Undo relayout: (rows, width) -> (B_pad, qdim) -> slice pad -> unsqueeze(2).
    F = f2.reshape(B_pad, qdim)[:B]
    return F[:, :, None]


if __name__ == "__main__":
    key = jax.random.PRNGKey(0)
    qdim, udim = 3, 2

    # --- 1) Small shapes the module actually sees (fast path, no Pallas). ---
    B = 4
    key, kq, kv, ku, ke = jax.random.split(key, 5)
    q = jax.random.normal(kq, (B, qdim), jnp.float32)
    v = jax.random.normal(kv, (B, qdim), jnp.float32)
    u = jax.random.normal(ku, (B, udim), jnp.float32)
    eta = jax.random.uniform(ke, (1, qdim), jnp.float32, minval=0.1, maxval=1.0)

    F = viscous_joint_damping_force(q, v, u, eta)
    jax.block_until_ready(F)
    F_ref = (eta * v)[:, :, None]
    assert F.shape == (B, qdim, 1), F.shape
    assert jnp.allclose(F, F_ref, atol=1e-6, rtol=1e-6), "mismatch vs reference (fast path)"

    # --- 2) Pallas path forced: single-tile grid, lane-dense relayout, pad/unpad. ---
    B2 = 2000  # not a multiple of 128 -> exercises batch padding + slice-off
    key, kv2 = jax.random.split(key)
    q2 = jnp.zeros((B2, qdim), jnp.float32)
    v2 = jax.random.normal(kv2, (B2, qdim), jnp.float32)
    u2 = jnp.zeros((B2, udim), jnp.float32)
    F2 = viscous_joint_damping_force(q2, v2, u2, eta, min_pallas_batch=0)
    jax.block_until_ready(F2)
    assert F2.shape == (B2, qdim, 1), F2.shape
    assert jnp.allclose(F2, (eta * v2)[:, :, None], atol=1e-6, rtol=1e-6), "mismatch (pallas, 1 tile)"

    # --- 3) Pallas path with a multi-step grid (small rows_per_block to keep it tiny). ---
    F3 = viscous_joint_damping_force(q2, v2, u2, eta, min_pallas_batch=0, rows_per_block=8)
    jax.block_until_ready(F3)
    assert jnp.allclose(F3, (eta * v2)[:, :, None], atol=1e-6, rtol=1e-6), "mismatch (pallas, tiled)"

    print("KERNEL_OK")
</pallas_src>

<mosaic_0001>
module attributes {stable_mosaic.version = 11 : i64} {
  func.func @_viscous_damping_kernel(%arg0: i32, %arg1: memref<1x384xf32, #tpu.memory_space<vmem>>, %arg2: memref<16x384xf32, #tpu.memory_space<vmem>>, %arg3: memref<16x384xf32, #tpu.memory_space<vmem>>) attributes {dimension_semantics = [#tpu.dimension_semantics<arbitrary>], iteration_bounds = array<i64: 1>, scalar_prefetch = 0 : i64, scratch_operands = 0 : i64, tpu.core_type = #tpu.core_type<tc>, window_params = [{pipeline_mode = #tpu.pipeline_mode<synchronous>, transform_indices = @transform_0, window_bounds = array<i64: 1, 384>}, {transform_indices = @transform_1, window_bounds = array<i64: 16, 384>}, {transform_indices = @transform_2, window_bounds = array<i64: 16, 384>}]} {
    %c0 = arith.constant 0 : index
    %c0_0 = arith.constant 0 : index
    %0 = vector.load %arg1[%c0, %c0_0] : memref<1x384xf32, #tpu.memory_space<vmem>>, vector<1x384xf32>
    %c0_1 = arith.constant 0 : index
    %c0_2 = arith.constant 0 : index
    %1 = vector.load %arg2[%c0_1, %c0_2] : memref<16x384xf32, #tpu.memory_space<vmem>>, vector<16x384xf32>
    %2 = vector.broadcast %0 : vector<1x384xf32> to vector<16x384xf32>
    %3 = arith.mulf %2, %1 : vector<16x384xf32>
    %c0_3 = arith.constant 0 : index
    %c0_4 = arith.constant 0 : index
    %4 = vector.load %arg3[%c0_3, %c0_4] : memref<16x384xf32, #tpu.memory_space<vmem>>, vector<16x384xf32>
    tpu.vector_store %arg3[%c0_3, %c0_4], %3 {strides = array<i32>} : memref<16x384xf32, #tpu.memory_space<vmem>>, vector<16x384xf32>,
    return
  }
  func.func @transform_0(%arg0: i32) -> (i32, i32) {
    %c0_i32 = arith.constant 0 : i32
    %c0_i32_0 = arith.constant 0 : i32
    %c0_i32_1 = arith.constant 0 : i32
    return %c0_i32, %c0_i32_0 : i32, i32
  }
  func.func @transform_1(%arg0: i32) -> (i32, i32) {
    %c0_i32 = arith.constant 0 : i32
    %c0_i32_0 = arith.constant 0 : i32
    return %arg0, %c0_i32 : i32, i32
  }
  func.func @transform_2(%arg0: i32) -> (i32, i32) {
    %c0_i32 = arith.constant 0 : i32
    %c0_i32_0 = arith.constant 0 : i32
    return %arg0, %c0_i32 : i32, i32
  }
}

</mosaic_0001>

<llo_original>
// kernel: tpu_custom_call.1
$region0: #{tpu_custom_call.1}
  #allocation0 [shape = 'u32[]', space=smem, size = 0x4, offset = 0x4, fixed_abs, tag = 'smem constant byte address 0x4 - core index']
  #allocation1 [shape = 'u32[144,128]{1,0:T(1,128)}', space=vmem, size = 0x12000, scoped, tag = 'internal scratch']
  %s0 = inlined_call_operand.hbm [shape: f32[1,384], index: 0, kind: input, shape index: {}]
  %s1 = inlined_call_operand.hbm [shape: f32[16,384], index: 1, kind: input, shape index: {}]
  %s2 = inlined_call_operand.hbm [shape: f32[16,384], index: 2, kind: output, shape index: {}]
  %s3 = sld [smem:[#allocation0]]
  $region26: #{tpu_custom_call.1} parent=0
    _
  %s5 = ssub.s32 1, %s3
  %s6 = scalar_select 0, %s5, %s3
  $region1: #{tpu_custom_call.1} parent=0
    #allocation2 [shape = 'u8[1536]{0}', space=vmem, size = 0x800, scoped, tag = 'input window, operand 0, single buffered']
    #allocation3 [shape = 's32[1]{0}', space=sflag, size = 0x4, scoped, tag = 'scoped memory for tpu_custom_call.1']
    #allocation4 [shape = 's32[1]{0}', space=sflag, size = 0x4, scoped, tag = 'scoped memory for tpu_custom_call.1']
    #allocation5 [shape = 'u8[24576]{0}', space=vmem, size = 0x6000, scoped, tag = 'input window, operand 1, single buffered']
    #allocation6 [shape = 's32[1]{0}', space=sflag, size = 0x4, scoped, tag = 'scoped memory for tpu_custom_call.1']
    #allocation7 [shape = 'u8[24576]{0}', space=vmem, size = 0x6000, scoped, tag = 'output window, operand 0, single buffered']
    %7 = vsyncpa [#allocation3], 0
    %8 = vsyncpa [#allocation6], 0
    %9 = vsyncpa [#allocation4], 0
    // Predicated region
    $region2: #{tpu_custom_call.1} parent=1 // pred_check
      _
    $region3: #{tpu_custom_call.1} parent=1 // pred_check_branch
      %11 = sbr.rel (0) target = $region5
    $region4: #{tpu_custom_call.1} parent=1 // pred_region
      %s13 = ssub.s32 48, 48
      %14 = vsyncadd [#allocation3], %s13
      %s16 = sshll.u32 [#allocation2], 4
      %s17 = int_to_ptr.vmem [resolvable:$true] %s16
      %19 = dma.hbm_to_vmem [thread:$0]  %s0, 48, %s17, [#allocation3]
    $region5: #{tpu_custom_call.1} parent=1 // pred_fallthru
      _
    // Predicated region
    $region6: #{tpu_custom_call.1} parent=1 // pred_check
      _
    $region7: #{tpu_custom_call.1} parent=1 // pred_check_branch
      %21 = sbr.rel (0) target = $region9
    $region8: #{tpu_custom_call.1} parent=1 // pred_region
      %s23 = ssub.s32 768, 768
      %24 = vsyncadd [#allocation6], %s23
      %s25 = sshll.u32 [#allocation5], 4
      %s26 = int_to_ptr.vmem [resolvable:$true] %s25
      %31 = dma.hbm_to_vmem [thread:$0]  %s1, 768, %s26, [#allocation6], 384, 384, 24
    $region9: #{tpu_custom_call.1} parent=1 // pred_fallthru
      _
    // Predicated region
    $region10: #{tpu_custom_call.1} parent=1 // pred_check
      _
    $region11: #{tpu_custom_call.1} parent=1 // pred_check_branch
      %33 = sbr.rel (0) target = $region13
    $region12: #{tpu_custom_call.1} parent=1 // pred_region
      %34 = dma.done [#allocation3], 48
    $region13: #{tpu_custom_call.1} parent=1 // pred_fallthru
      _
    // Predicated region
    $region14: #{tpu_custom_call.1} parent=1 // pred_check
      _
    $region15: #{tpu_custom_call.1} parent=1 // pred_check_branch
      %36 = sbr.rel (0) target = $region17
    $region16: #{tpu_custom_call.1} parent=1 // pred_region
      %37 = dma.done [#allocation6], 768
    $region17: #{tpu_custom_call.1} parent=1 // pred_fallthru
      _
    %v38 = vld [vmem:[#allocation2] sm:$0x7]
    %v39 = vld [vmem:[#allocation5] sm:$0xff]
    %v40 = vld [vmem:[#allocation5 + $0x8] sm:$0xff]
    %v41 = vld [vmem:[#allocation5 + $0x10] sm:$0xff]
    %v42 = vld [vmem:[#allocation5 + $0x18] sm:$0xff]
    %v43 = vld [vmem:[#allocation5 + $0x20] sm:$0xff]
    %v44 = vld [vmem:[#allocation5 + $0x28] sm:$0xff]
    %v46 = vlaneseq
    %v47 = vshrl.u32 %v46, 7
    %v48 = vsub.s32 0, %v47
    %v49 = vrot.slane %v38, %v48
    %v50 = vlaneseq
    %v51 = vshrl.u32 %v50, 7
    %v52 = vsub.s32 1, %v51
    %v53 = vrot.slane %v38, %v52
    %v54 = vlaneseq
    %v55 = vshrl.u32 %v54, 7
    %v56 = vsub.s32 2, %v55
    %v57 = vrot.slane %v38, %v56
    %v61 = vmul.f32 %v49, %v39
    %v62 = vmul.f32 %v53, %v40
    %v63 = vmul.f32 %v57, %v41
    %v64 = vmul.f32 %v49, %v42
    %v65 = vmul.f32 %v53, %v43
    %v66 = vmul.f32 %v57, %v44
    %67 = vst [vmem:[#allocation7] sm:$0xff] %v61
    %68 = vst [vmem:[#allocation7 + $0x8] sm:$0xff] %v62
    %69 = vst [vmem:[#allocation7 + $0x10] sm:$0xff] %v63
    %70 = vst [vmem:[#allocation7 + $0x18] sm:$0xff] %v64
    %71 = vst [vmem:[#allocation7 + $0x20] sm:$0xff] %v65
    %72 = vst [vmem:[#allocation7 + $0x28] sm:$0xff] %v66
    // Predicated region
    $region18: #{tpu_custom_call.1} parent=1 // pred_check
      _
    $region19: #{tpu_custom_call.1} parent=1 // pred_check_branch
      %74 = sbr.rel (0) target = $region21
    $region20: #{tpu_custom_call.1} parent=1 // pred_region
      %s76 = ssub.s32 768, 768
      %77 = vsyncadd [#allocation4], %s76
      %s78 = sshll.u32 [#allocation7], 4
      %s79 = int_to_ptr.vmem [resolvable:$true] %s78
      %84 = dma.vmem_to_hbm [thread:$0]  %s79, 768, %s2, [#allocation4], 384, 384, 24
    $region21: #{tpu_custom_call.1} parent=1 // pred_fallthru
      _
    // Predicated region
    $region22: #{tpu_custom_call.1} parent=1 // pred_check
      _
    $region23: #{tpu_custom_call.1} parent=1 // pred_check_branch
      %86 = sbr.rel (0) target = $region25
    $region24: #{tpu_custom_call.1} parent=1 // pred_region
      %87 = dma.done [#allocation4], 768
    $region25: #{tpu_custom_call.1} parent=1 // pred_fallthru
      _
    %88 = vsyncpa [#allocation3], 1
    %89 = vsyncpa [#allocation6], 1
    %90 = vsyncpa [#allocation4], 1

</llo_original>
